<compile_context>
chip_gen: v7x
topology: tpu7x:2x2x1
jax: 0.10.0
libtpu: 0.0.40
codegen_flags: <defaults>
</compile_context>

<pallas_src>
import functools

import jax
import jax.numpy as jnp
from jax import lax
from jax.experimental import pallas as pl
from jax.experimental.pallas import tpu as pltpu


_TN_MAX = 1024          # max lanes (kept axis) per block, multiple of 128
_TINY_BYTES = 256 * 1024  # below this, plain XLA mean beats a kernel launch


def _cdiv(a, b):
    return -(-a // b)


def _chip_budget():
    """Returns (target input-block bytes, vmem_limit_bytes) per chip family."""
    vmem_cap = 64 * 1024 * 1024
    try:
        info = pltpu.get_tpu_info()
        vmem_cap = int(getattr(info, "vmem_capacity_bytes", vmem_cap))
    except Exception:
        pass  # conservative fallback (v7x-sized)
    if vmem_cap >= 100 * 1024 * 1024:        # v5e / v6e: 128 MiB VMEM
        return 16 * 1024 * 1024, 48 * 1024 * 1024
    return 8 * 1024 * 1024, 40 * 1024 * 1024  # v7x: 64 MiB VMEM per TC


def _mean_axis1_kernel(x_ref, o_ref, acc_ref, *, inv_r, rc, r_total,
                       k_half, split, mask_rows):
    # x_ref:   (tb, rc, tn)  one chunk of the reduced axis
    # o_ref:   (tb, tn)      mean (or f32 partial sum in split mode)
    # acc_ref: (tb, tn) f32  running sum over R-chunks
    if split:
        k = pl.program_id(3)
        chunk = pl.program_id(0) * k_half + k    # logical R-chunk index
        k_last = k_half - 1
    else:
        k = pl.program_id(2)
        chunk = k
        k_last = pl.num_programs(2) - 1

    @pl.when(k == 0)
    def _():
        acc_ref[...] = jnp.zeros_like(acc_ref)

    x = x_ref[...].astype(jnp.float32)
    if mask_rows:
        # Zero garbage sublanes of the ragged tail chunk (and, in split mode,
        # any fully-out-of-range overshoot chunk) instead of padding R in HBM.
        rows = chunk * rc + lax.broadcasted_iota(jnp.int32, x_ref.shape, 1)
        x = jnp.where(rows < r_total, x, 0.0)
    acc_ref[...] += jnp.sum(x, axis=1)

    @pl.when(k == k_last)
    def _():
        res = acc_ref[...]
        if inv_r != 1.0:
            res = res * inv_r
        o_ref[...] = res.astype(o_ref.dtype)


def _pallas_mean_axis1(x3, *, rc_max=None, force_pallas=False):
    """x3: (B, R, N) -> (B, N), mean over axis 1."""
    B, R, N = x3.shape
    dtype = x3.dtype
    itemsize = jnp.dtype(dtype).itemsize

    # Tiny inputs: launch + per-step overhead dominate; let XLA do it.
    if not force_pallas and x3.size * itemsize < _TINY_BYTES:
        return jnp.mean(x3.astype(jnp.float32), axis=1).astype(dtype)

    inv_r = 1.0 / float(R)

    # Output block (tb, tn): tb multiple of 8*packing (unmasked epilogue
    # store for narrow dtypes) or equal to B; tn multiple of 128 or equal N.
    pack = max(1, 4 // itemsize)
    tb_full = 8 * pack
    tb = tb_full if B >= tb_full else B
    tn = N if N <= _TN_MAX else _TN_MAX

    # Reduction chunk: sized so the input block hits the per-chip byte
    # target (amortizes ~0.35us/step); multiple of 8, or full R.
    blk_target, vmem_limit = _chip_budget()
    if rc_max is None:
        rc_max = max(8, (blk_target // (tb * tn * itemsize)) // 8 * 8)
    rc = R if R <= rc_max else max(8, (rc_max // 8) * 8)

    nb = _cdiv(B, tb)
    nn = _cdiv(N, tn)
    kc = _cdiv(R, rc)
    mask_rows = (R % rc) != 0

    # If the parallel grid degenerates to a single block, split the reduction
    # across a leading size-2 parallel axis so both v7x TensorCores stream
    # half of the HBM traffic (harmless on single-TC chips).
    split = (nb == 1) and (nn == 1) and (kc >= 2)

    if split:
        k_half = _cdiv(kc, 2)
        grid = (2, nb, nn, k_half)
        kernel = functools.partial(
            _mean_axis1_kernel, inv_r=1.0, rc=rc, r_total=R,
            k_half=k_half, split=True, mask_rows=True)
        # Clamp the R-chunk index so an odd chunk count never DMAs out of
        # bounds; the in-kernel row mask zeroes the overshoot chunk entirely.
        in_specs = [pl.BlockSpec(
            (tb, rc, tn),
            lambda s, i, j, k: (i, jnp.minimum(s * k_half + k, kc - 1), j))]
        out_specs = pl.BlockSpec((None, tb, tn), lambda s, i, j, k: (s, i, j))
        out_shape = jax.ShapeDtypeStruct((2, B, N), jnp.float32)
        dims = ("parallel", "parallel", "parallel", "arbitrary")
    else:
        grid = (nb, nn, kc)
        kernel = functools.partial(
            _mean_axis1_kernel, inv_r=inv_r, rc=rc, r_total=R,
            k_half=0, split=False, mask_rows=mask_rows)
        in_specs = [pl.BlockSpec((tb, rc, tn), lambda i, j, k: (i, k, j))]
        out_specs = pl.BlockSpec((tb, tn), lambda i, j, k: (i, j))
        out_shape = jax.ShapeDtypeStruct((B, N), dtype)
        dims = ("parallel", "parallel", "arbitrary")

    out = pl.pallas_call(
        kernel,
        out_shape=out_shape,
        grid_spec=pltpu.PrefetchScalarGridSpec(
            num_scalar_prefetch=0,
            grid=grid,
            in_specs=in_specs,
            out_specs=out_specs,
            scratch_shapes=[pltpu.VMEM((tb, tn), jnp.float32)],
        ),
        compiler_params=pltpu.CompilerParams(
            dimension_semantics=dims,
            vmem_limit_bytes=vmem_limit,
        ),
    )(x3)

    if split:
        out = ((out[0] + out[1]) * inv_r).astype(dtype)
    return out


class AdaptivePoolerPallas:
    """JAX/Pallas equivalent of the PyTorch `adaptive_pooler` module.

    AdaptiveAvgPool1d(1) has no learnable parameters, so there is nothing to
    initialize; the forward is a mean over the pooled axis.
    """

    def __init__(self, out_channel=1, output_shape=None, dense=False):
        self.out_channel = out_channel
        self.output_shape = output_shape
        self.dense = dense
        if out_channel != 1 or dense:
            # TODO(synk): general AdaptiveAvgPool1d binning (out_channel > 1 /
            # dense=True) not implemented; only the default out_channel=1 path.
            raise NotImplementedError("only out_channel=1, dense=False supported")

    def __call__(self, x):
        if x.ndim == 3:
            # (B, S, H): transpose(1,2) + pool(1) over S == mean over axis 1.
            pooled = _pallas_mean_axis1(x)            # (B, H)
            if self.output_shape is not None:
                pooled = pooled.reshape(x.shape[0], *self.output_shape)
            else:
                pooled = pooled.reshape(x.shape[0], -1)
            return pooled
        else:
            b, c, h, w = x.shape
            pooled = _pallas_mean_axis1(x.reshape(b, c, h * w))   # mean over C
            return pooled.reshape(b, h, w)            # out_channel == 1 path


if __name__ == "__main__":
    key = jax.random.PRNGKey(0)
    k1, k2, k3, k4, k5 = jax.random.split(key, 5)

    pooler = AdaptivePoolerPallas(out_channel=1, output_shape=None, dense=False)

    # 1) 4D spec-sized case (B=2, C=4, H=W=16): tiny -> XLA bypass path.
    x4 = jax.random.normal(k1, (2, 4, 16, 16), dtype=jnp.float32)
    y4 = jax.block_until_ready(pooler(x4))
    ref4 = jnp.mean(x4, axis=1)
    assert y4.shape == (2, 16, 16) and y4.dtype == x4.dtype
    assert jnp.allclose(y4, ref4, atol=1e-5, rtol=1e-5)

    # 2) 3D spec-sized case (B=2, S=8, H=32): tiny -> XLA bypass path.
    x3 = jax.random.normal(k2, (2, 8, 32), dtype=jnp.float32)
    y3 = jax.block_until_ready(pooler(x3))
    ref3 = jnp.mean(x3, axis=1)
    assert y3.shape == (2, 32) and y3.dtype == x3.dtype
    assert jnp.allclose(y3, ref3, atol=1e-5, rtol=1e-5)

    # 3) Moderate 3D case: exercises the Pallas kernel (single-chunk path,
    #    full-dim N tile that is not a multiple of 128, no padding anywhere).
    xm = jax.random.normal(k3, (2, 520, 200), dtype=jnp.float32)
    ym = jax.block_until_ready(pooler(xm))
    refm = jnp.mean(xm, axis=1)
    assert ym.shape == (2, 200) and ym.dtype == xm.dtype
    assert jnp.allclose(ym, refm, atol=1e-5, rtol=1e-5)

    # 4) Chunked reduction with ragged tail R chunk (in-kernel mask), ragged
    #    last B tile, multi-block parallel grid (forced small rc).
    xa = jax.random.normal(k4, (10, 37, 300), dtype=jnp.float32)
    ya = jax.block_until_ready(_pallas_mean_axis1(xa, rc_max=16, force_pallas=True))
    refa = jnp.mean(xa, axis=1)
    assert ya.shape == (10, 300)
    assert jnp.allclose(ya, refa, atol=1e-5, rtol=1e-5)

    # 5) Degenerate (1,1,K) grid -> two-way reduction split (v7x dual-TC path);
    #    odd chunk count exercises the clamped index_map + full tail mask.
    xs = jax.random.normal(k5, (2, 37, 160), dtype=jnp.float32)
    ys = jax.block_until_ready(_pallas_mean_axis1(xs, rc_max=16, force_pallas=True))
    refs = jnp.mean(xs, axis=1)
    assert ys.shape == (2, 160) and ys.dtype == xs.dtype
    assert jnp.allclose(ys, refs, atol=1e-5, rtol=1e-5)

    # 6) bf16 input: taller output tile keeps the epilogue store unmasked;
    #    f32 accumulation inside the kernel.
    xb = jax.random.normal(k1, (20, 64, 256), dtype=jnp.float32).astype(jnp.bfloat16)
    yb = jax.block_until_ready(_pallas_mean_axis1(xb, rc_max=32, force_pallas=True))
    refb = jnp.mean(xb.astype(jnp.float32), axis=1).astype(jnp.bfloat16)
    assert yb.shape == (20, 256) and yb.dtype == jnp.bfloat16
    assert jnp.allclose(yb.astype(jnp.float32), refb.astype(jnp.float32),
                        atol=1e-2, rtol=1e-2)

    print("KERNEL_OK")
</pallas_src>

<mosaic_0001>
module attributes {stable_mosaic.version = 11 : i64} {
  func.func @_mean_axis1_kernel(%arg0: i32, %arg1: i32, %arg2: i32, %arg3: memref<2x520x200xf32, #tpu.memory_space<vmem>>, %arg4: memref<2x200xf32, #tpu.memory_space<vmem>>, %arg5: memref<2x200xf32, #tpu.memory_space<vmem>>) attributes {dimension_semantics = [#tpu.dimension_semantics<parallel>, #tpu.dimension_semantics<parallel>, #tpu.dimension_semantics<arbitrary>], iteration_bounds = array<i64: 1, 1, 1>, scalar_prefetch = 0 : i64, scratch_operands = 1 : i64, tpu.core_type = #tpu.core_type<tc>, window_params = [{transform_indices = @transform_0, window_bounds = array<i64: 2, 520, 200>}, {transform_indices = @transform_1, window_bounds = array<i64: 2, 200>}]} {
    %c0_i32 = arith.constant 0 : i32
    %0 = arith.cmpi eq, %arg2, %c0_i32 : i32
    %1 = arith.extui %0 : i1 to i32
    %c0_i32_0 = arith.constant 0 : i32
    %2 = arith.cmpi ne, %1, %c0_i32_0 : i32
    scf.if %2 {
      %cst_9 = arith.constant 0.000000e+00 : f32
      %11 = vector.broadcast %cst_9 : f32 to vector<2x200xf32>
      %c0_10 = arith.constant 0 : index
      %c0_11 = arith.constant 0 : index
      %12 = vector.load %arg5[%c0_10, %c0_11] : memref<2x200xf32, #tpu.memory_space<vmem>>, vector<2x200xf32>
      tpu.vector_store %arg5[%c0_10, %c0_11], %11 {strides = array<i32>} : memref<2x200xf32, #tpu.memory_space<vmem>>, vector<2x200xf32>,
    } else {
    }
    %c0 = arith.constant 0 : index
    %c0_1 = arith.constant 0 : index
    %c0_2 = arith.constant 0 : index
    %3 = vector.load %arg3[%c0, %c0_1, %c0_2] : memref<2x520x200xf32, #tpu.memory_space<vmem>>, vector<2x520x200xf32>
    %c0_3 = arith.constant 0 : index
    %c0_4 = arith.constant 0 : index
    %4 = vector.load %arg5[%c0_3, %c0_4] : memref<2x200xf32, #tpu.memory_space<vmem>>, vector<2x200xf32>
    %cst = arith.constant dense<0.000000e+00> : vector<2x200xf32>
    %5 = vector.multi_reduction <add>, %3, %cst [1] : vector<2x520x200xf32> to vector<2x200xf32>
    %6 = arith.addf %4, %5 : vector<2x200xf32>
    %c0_5 = arith.constant 0 : index
    %c0_6 = arith.constant 0 : index
    %7 = vector.load %arg5[%c0_5, %c0_6] : memref<2x200xf32, #tpu.memory_space<vmem>>, vector<2x200xf32>
    tpu.vector_store %arg5[%c0_5, %c0_6], %6 {strides = array<i32>} : memref<2x200xf32, #tpu.memory_space<vmem>>, vector<2x200xf32>,
    %c0_i32_7 = arith.constant 0 : i32
    %8 = arith.cmpi eq, %arg2, %c0_i32_7 : i32
    %9 = arith.extui %8 : i1 to i32
    %c0_i32_8 = arith.constant 0 : i32
    %10 = arith.cmpi ne, %9, %c0_i32_8 : i32
    scf.if %10 {
      %c0_9 = arith.constant 0 : index
      %c0_10 = arith.constant 0 : index
      %11 = vector.load %arg5[%c0_9, %c0_10] : memref<2x200xf32, #tpu.memory_space<vmem>>, vector<2x200xf32>
      %cst_11 = arith.constant 0.00192307692 : f32
      %12 = vector.broadcast %cst_11 : f32 to vector<2x200xf32>
      %13 = arith.mulf %11, %12 : vector<2x200xf32>
      %c0_12 = arith.constant 0 : index
      %c0_13 = arith.constant 0 : index
      %14 = vector.load %arg4[%c0_12, %c0_13] : memref<2x200xf32, #tpu.memory_space<vmem>>, vector<2x200xf32>
      tpu.vector_store %arg4[%c0_12, %c0_13], %13 {strides = array<i32>} : memref<2x200xf32, #tpu.memory_space<vmem>>, vector<2x200xf32>,
    } else {
    }
    return
  }
  func.func @transform_0(%arg0: i32, %arg1: i32, %arg2: i32) -> (i32, i32, i32) {
    %c0_i32 = arith.constant 0 : i32
    return %arg0, %arg2, %arg1 : i32, i32, i32
  }
  func.func @transform_1(%arg0: i32, %arg1: i32, %arg2: i32) -> (i32, i32) {
    %c0_i32 = arith.constant 0 : i32
    return %arg0, %arg1 : i32, i32
  }
}

</mosaic_0001>

<llo_original>
// kernel: tpu_custom_call.1
$region0: #{tpu_custom_call.1}
  #allocation0 [shape = 'u32[]', space=smem, size = 0x4, offset = 0x4, fixed_abs, tag = 'smem constant byte address 0x4 - core index']
  #allocation1 [shape = 'u32[144,128]{1,0:T(1,128)}', space=vmem, size = 0x12000, scoped, tag = 'internal scratch']
  #allocation2 [shape = 'f32[2,200]{1,0:T(2,128)}', space=vmem, size = 0x800, scoped, tag = 'scratch operand']
  %s0 = inlined_call_operand.vmem [shape: f32[2,520,200], index: 0, kind: input, shape index: {}]
  %s1 = inlined_call_operand.hbm [shape: f32[2,200], index: 1, kind: output, shape index: {}]
  %s2 = sld [smem:[#allocation0]]
  $region22: #{tpu_custom_call.1} parent=0
    _
  %s4 = ssub.s32 1, %s2
  %s5 = scalar_select 0, %s4, %s2
  $region1: #{tpu_custom_call.1} parent=0
    #allocation3 [shape = 'u8[2048]{0}', space=vmem, size = 0x800, scoped, tag = 'output window, operand 0, single buffered']
    #allocation4 [shape = 's32[1]{0}', space=sflag, size = 0x4, scoped, tag = 'scoped memory for tpu_custom_call.1']
    %6 = vsyncpa [#allocation4], 0
    // Predicated region
    $region2: #{tpu_custom_call.1} parent=1 // pred_check
      _
    $region3: #{tpu_custom_call.1} parent=1 // pred_check_branch
      %8 = sbr.rel (0) target = $region5
    $region4: #{tpu_custom_call.1} parent=1 // pred_region
      _
    $region5: #{tpu_custom_call.1} parent=1 // pred_fallthru
      _
    %p9 = scmp.eq.s32.totalorder 0, 0
    // Predicated region
    $region6: #{tpu_custom_call.1} parent=1 // pred_check
      %p10 = pneg %p9
    $region7: #{tpu_custom_call.1} parent=1 // pred_check_branch
      %12 = sbr.rel (%p10) target = $region9
    $region8: #{tpu_custom_call.1} parent=1 // pred_region
      %vm13 = vcmask 1041408
      %vm14 = vcmask 584706
      %vm15 = vmor %vm14, %vm13
      %16 = vst.msk [vmem:[#allocation2] sm:$0xf] %vm15, 0.0
    $region9: #{tpu_custom_call.1} parent=1 // pred_fallthru
      _
    %v17 = vld [vmem:[%s0] sm:$0xff]
    %v18 = vld [vmem:[%s0 + $0x8] sm:$0xff]
    %v19 = vld [vmem:[%s0 + $0x10] sm:$0xff]
    %v20 = vld [vmem:[%s0 + $0x18] sm:$0xff]
    %v21 = vld [vmem:[%s0 + $0x20] sm:$0xff]
    %v22 = vld [vmem:[%s0 + $0x28] sm:$0xff]
    %v23 = vld [vmem:[%s0 + $0x30] sm:$0xff]
    %v24 = vld [vmem:[%s0 + $0x38] sm:$0xff]
    %v25 = vld [vmem:[%s0 + $0x40] sm:$0xff]
    %v26 = vld [vmem:[%s0 + $0x48] sm:$0xff]
    %v27 = vld [vmem:[%s0 + $0x50] sm:$0xff]
    %v28 = vld [vmem:[%s0 + $0x58] sm:$0xff]
    %v29 = vld [vmem:[%s0 + $0x60] sm:$0xff]
    %v30 = vld [vmem:[%s0 + $0x68] sm:$0xff]
    %v31 = vld [vmem:[%s0 + $0x70] sm:$0xff]
    %v32 = vld [vmem:[%s0 + $0x78] sm:$0xff]
    %v33 = vld [vmem:[%s0 + $0x80] sm:$0xff]
    %v34 = vld [vmem:[%s0 + $0x88] sm:$0xff]
    %v35 = vld [vmem:[%s0 + $0x90] sm:$0xff]
    %v36 = vld [vmem:[%s0 + $0x98] sm:$0xff]
    %v37 = vld [vmem:[%s0 + $0xa0] sm:$0xff]
    %v38 = vld [vmem:[%s0 + $0xa8] sm:$0xff]
    %v39 = vld [vmem:[%s0 + $0xb0] sm:$0xff]
    %v40 = vld [vmem:[%s0 + $0xb8] sm:$0xff]
    %v41 = vld [vmem:[%s0 + $0xc0] sm:$0xff]
    %v42 = vld [vmem:[%s0 + $0xc8] sm:$0xff]
    %v43 = vld [vmem:[%s0 + $0xd0] sm:$0xff]
    %v44 = vld [vmem:[%s0 + $0xd8] sm:$0xff]
    %v45 = vld [vmem:[%s0 + $0xe0] sm:$0xff]
    %v46 = vld [vmem:[%s0 + $0xe8] sm:$0xff]
    %v47 = vld [vmem:[%s0 + $0xf0] sm:$0xff]
    %v48 = vld [vmem:[%s0 + $0xf8] sm:$0xff]
    %v49 = vld [vmem:[%s0 + $0x100] sm:$0xff]
    %v50 = vld [vmem:[%s0 + $0x108] sm:$0xff]
    %v51 = vld [vmem:[%s0 + $0x110] sm:$0xff]
    %v52 = vld [vmem:[%s0 + $0x118] sm:$0xff]
    %v53 = vld [vmem:[%s0 + $0x120] sm:$0xff]
    %v54 = vld [vmem:[%s0 + $0x128] sm:$0xff]
    %v55 = vld [vmem:[%s0 + $0x130] sm:$0xff]
    %v56 = vld [vmem:[%s0 + $0x138] sm:$0xff]
    %v57 = vld [vmem:[%s0 + $0x140] sm:$0xff]
    %v58 = vld [vmem:[%s0 + $0x148] sm:$0xff]
    %v59 = vld [vmem:[%s0 + $0x150] sm:$0xff]
    %v60 = vld [vmem:[%s0 + $0x158] sm:$0xff]
    %v61 = vld [vmem:[%s0 + $0x160] sm:$0xff]
    %v62 = vld [vmem:[%s0 + $0x168] sm:$0xff]
    %v63 = vld [vmem:[%s0 + $0x170] sm:$0xff]
    %v64 = vld [vmem:[%s0 + $0x178] sm:$0xff]
    %v65 = vld [vmem:[%s0 + $0x180] sm:$0xff]
    %v66 = vld [vmem:[%s0 + $0x188] sm:$0xff]
    %v67 = vld [vmem:[%s0 + $0x190] sm:$0xff]
    %v68 = vld [vmem:[%s0 + $0x198] sm:$0xff]
    %v69 = vld [vmem:[%s0 + $0x1a0] sm:$0xff]
    %v70 = vld [vmem:[%s0 + $0x1a8] sm:$0xff]
    %v71 = vld [vmem:[%s0 + $0x1b0] sm:$0xff]
    %v72 = vld [vmem:[%s0 + $0x1b8] sm:$0xff]
    %v73 = vld [vmem:[%s0 + $0x1c0] sm:$0xff]
    %v74 = vld [vmem:[%s0 + $0x1c8] sm:$0xff]
    %v75 = vld [vmem:[%s0 + $0x1d0] sm:$0xff]
    %v76 = vld [vmem:[%s0 + $0x1d8] sm:$0xff]
    %v77 = vld [vmem:[%s0 + $0x1e0] sm:$0xff]
    %v78 = vld [vmem:[%s0 + $0x1e8] sm:$0xff]
    %v79 = vld [vmem:[%s0 + $0x1f0] sm:$0xff]
    %v80 = vld [vmem:[%s0 + $0x1f8] sm:$0xff]
    %v81 = vld [vmem:[%s0 + $0x200] sm:$0xff]
    %v82 = vld [vmem:[%s0 + $0x208] sm:$0xff]
    %v83 = vld [vmem:[%s0 + $0x210] sm:$0xff]
    %v84 = vld [vmem:[%s0 + $0x218] sm:$0xff]
    %v85 = vld [vmem:[%s0 + $0x220] sm:$0xff]
    %v86 = vld [vmem:[%s0 + $0x228] sm:$0xff]
    %v87 = vld [vmem:[%s0 + $0x230] sm:$0xff]
    %v88 = vld [vmem:[%s0 + $0x238] sm:$0xff]
    %v89 = vld [vmem:[%s0 + $0x240] sm:$0xff]
    %v90 = vld [vmem:[%s0 + $0x248] sm:$0xff]
    %v91 = vld [vmem:[%s0 + $0x250] sm:$0xff]
    %v92 = vld [vmem:[%s0 + $0x258] sm:$0xff]
    %v93 = vld [vmem:[%s0 + $0x260] sm:$0xff]
    %v94 = vld [vmem:[%s0 + $0x268] sm:$0xff]
    %v95 = vld [vmem:[%s0 + $0x270] sm:$0xff]
    %v96 = vld [vmem:[%s0 + $0x278] sm:$0xff]
    %v97 = vld [vmem:[%s0 + $0x280] sm:$0xff]
    %v98 = vld [vmem:[%s0 + $0x288] sm:$0xff]
    %v99 = vld [vmem:[%s0 + $0x290] sm:$0xff]
    %v100 = vld [vmem:[%s0 + $0x298] sm:$0xff]
    %v101 = vld [vmem:[%s0 + $0x2a0] sm:$0xff]
    %v102 = vld [vmem:[%s0 + $0x2a8] sm:$0xff]
    %v103 = vld [vmem:[%s0 + $0x2b0] sm:$0xff]
    %v104 = vld [vmem:[%s0 + $0x2b8] sm:$0xff]
    %v105 = vld [vmem:[%s0 + $0x2c0] sm:$0xff]
    %v106 = vld [vmem:[%s0 + $0x2c8] sm:$0xff]
    %v107 = vld [vmem:[%s0 + $0x2d0] sm:$0xff]
    %v108 = vld [vmem:[%s0 + $0x2d8] sm:$0xff]
    %v109 = vld [vmem:[%s0 + $0x2e0] sm:$0xff]
    %v110 = vld [vmem:[%s0 + $0x2e8] sm:$0xff]
    %v111 = vld [vmem:[%s0 + $0x2f0] sm:$0xff]
    %v112 = vld [vmem:[%s0 + $0x2f8] sm:$0xff]
    %v113 = vld [vmem:[%s0 + $0x300] sm:$0xff]
    %v114 = vld [vmem:[%s0 + $0x308] sm:$0xff]
    %v115 = vld [vmem:[%s0 + $0x310] sm:$0xff]
    %v116 = vld [vmem:[%s0 + $0x318] sm:$0xff]
    %v117 = vld [vmem:[%s0 + $0x320] sm:$0xff]
    %v118 = vld [vmem:[%s0 + $0x328] sm:$0xff]
    %v119 = vld [vmem:[%s0 + $0x330] sm:$0xff]
    %v120 = vld [vmem:[%s0 + $0x338] sm:$0xff]
    %v121 = vld [vmem:[%s0 + $0x340] sm:$0xff]
    %v122 = vld [vmem:[%s0 + $0x348] sm:$0xff]
    %v123 = vld [vmem:[%s0 + $0x350] sm:$0xff]
    %v124 = vld [vmem:[%s0 + $0x358] sm:$0xff]
    %v125 = vld [vmem:[%s0 + $0x360] sm:$0xff]
    %v126 = vld [vmem:[%s0 + $0x368] sm:$0xff]
    %v127 = vld [vmem:[%s0 + $0x370] sm:$0xff]
    %v128 = vld [vmem:[%s0 + $0x378] sm:$0xff]
    %v129 = vld [vmem:[%s0 + $0x380] sm:$0xff]
    %v130 = vld [vmem:[%s0 + $0x388] sm:$0xff]
    %v131 = vld [vmem:[%s0 + $0x390] sm:$0xff]
    %v132 = vld [vmem:[%s0 + $0x398] sm:$0xff]
    %v133 = vld [vmem:[%s0 + $0x3a0] sm:$0xff]
    %v134 = vld [vmem:[%s0 + $0x3a8] sm:$0xff]
    %v135 = vld [vmem:[%s0 + $0x3b0] sm:$0xff]
    %v136 = vld [vmem:[%s0 + $0x3b8] sm:$0xff]
    %v137 = vld [vmem:[%s0 + $0x3c0] sm:$0xff]
    %v138 = vld [vmem:[%s0 + $0x3c8] sm:$0xff]
    %v139 = vld [vmem:[%s0 + $0x3d0] sm:$0xff]
    %v140 = vld [vmem:[%s0 + $0x3d8] sm:$0xff]
    %v141 = vld [vmem:[%s0 + $0x3e0] sm:$0xff]
    %v142 = vld [vmem:[%s0 + $0x3e8] sm:$0xff]
    %v143 = vld [vmem:[%s0 + $0x3f0] sm:$0xff]
    %v144 = vld [vmem:[%s0 + $0x3f8] sm:$0xff]
    %v145 = vld [vmem:[%s0 + $0x400] sm:$0xff]
    %v146 = vld [vmem:[%s0 + $0x408] sm:$0xff]
    %v147 = vld [vmem:[%s0 + $0x410] sm:$0xff]
    %v148 = vld [vmem:[%s0 + $0x418] sm:$0xff]
    %v149 = vld [vmem:[%s0 + $0x420] sm:$0xff]
    %v150 = vld [vmem:[%s0 + $0x428] sm:$0xff]
    %v151 = vld [vmem:[%s0 + $0x430] sm:$0xff]
    %v152 = vld [vmem:[%s0 + $0x438] sm:$0xff]
    %v153 = vld [vmem:[%s0 + $0x440] sm:$0xff]
    %v154 = vld [vmem:[%s0 + $0x448] sm:$0xff]
    %v155 = vld [vmem:[%s0 + $0x450] sm:$0xff]
    %v156 = vld [vmem:[%s0 + $0x458] sm:$0xff]
    %v157 = vld [vmem:[%s0 + $0x460] sm:$0xff]
    %v158 = vld [vmem:[%s0 + $0x468] sm:$0xff]
    %v159 = vld [vmem:[%s0 + $0x470] sm:$0xff]
    %v160 = vld [vmem:[%s0 + $0x478] sm:$0xff]
    %v161 = vld [vmem:[%s0 + $0x480] sm:$0xff]
    %v162 = vld [vmem:[%s0 + $0x488] sm:$0xff]
    %v163 = vld [vmem:[%s0 + $0x490] sm:$0xff]
    %v164 = vld [vmem:[%s0 + $0x498] sm:$0xff]
    %v165 = vld [vmem:[%s0 + $0x4a0] sm:$0xff]
    %v166 = vld [vmem:[%s0 + $0x4a8] sm:$0xff]
    %v167 = vld [vmem:[%s0 + $0x4b0] sm:$0xff]
    %v168 = vld [vmem:[%s0 + $0x4b8] sm:$0xff]
    %v169 = vld [vmem:[%s0 + $0x4c0] sm:$0xff]
    %v170 = vld [vmem:[%s0 + $0x4c8] sm:$0xff]
    %v171 = vld [vmem:[%s0 + $0x4d0] sm:$0xff]
    %v172 = vld [vmem:[%s0 + $0x4d8] sm:$0xff]
    %v173 = vld [vmem:[%s0 + $0x4e0] sm:$0xff]
    %v174 = vld [vmem:[%s0 + $0x4e8] sm:$0xff]
    %v175 = vld [vmem:[%s0 + $0x4f0] sm:$0xff]
    %v176 = vld [vmem:[%s0 + $0x4f8] sm:$0xff]
    %v177 = vld [vmem:[%s0 + $0x500] sm:$0xff]
    %v178 = vld [vmem:[%s0 + $0x508] sm:$0xff]
    %v179 = vld [vmem:[%s0 + $0x510] sm:$0xff]
    %v180 = vld [vmem:[%s0 + $0x518] sm:$0xff]
    %v181 = vld [vmem:[%s0 + $0x520] sm:$0xff]
    %v182 = vld [vmem:[%s0 + $0x528] sm:$0xff]
    %v183 = vld [vmem:[%s0 + $0x530] sm:$0xff]
    %v184 = vld [vmem:[%s0 + $0x538] sm:$0xff]
    %v185 = vld [vmem:[%s0 + $0x540] sm:$0xff]
    %v186 = vld [vmem:[%s0 + $0x548] sm:$0xff]
    %v187 = vld [vmem:[%s0 + $0x550] sm:$0xff]
    %v188 = vld [vmem:[%s0 + $0x558] sm:$0xff]
    %v189 = vld [vmem:[%s0 + $0x560] sm:$0xff]
    %v190 = vld [vmem:[%s0 + $0x568] sm:$0xff]
    %v191 = vld [vmem:[%s0 + $0x570] sm:$0xff]
    %v192 = vld [vmem:[%s0 + $0x578] sm:$0xff]
    %v193 = vld [vmem:[%s0 + $0x580] sm:$0xff]
    %v194 = vld [vmem:[%s0 + $0x588] sm:$0xff]
    %v195 = vld [vmem:[%s0 + $0x590] sm:$0xff]
    %v196 = vld [vmem:[%s0 + $0x598] sm:$0xff]
    %v197 = vld [vmem:[%s0 + $0x5a0] sm:$0xff]
    %v198 = vld [vmem:[%s0 + $0x5a8] sm:$0xff]
    %v199 = vld [vmem:[%s0 + $0x5b0] sm:$0xff]
    %v200 = vld [vmem:[%s0 + $0x5b8] sm:$0xff]
    %v201 = vld [vmem:[%s0 + $0x5c0] sm:$0xff]
    %v202 = vld [vmem:[%s0 + $0x5c8] sm:$0xff]
    %v203 = vld [vmem:[%s0 + $0x5d0] sm:$0xff]
    %v204 = vld [vmem:[%s0 + $0x5d8] sm:$0xff]
    %v205 = vld [vmem:[%s0 + $0x5e0] sm:$0xff]
    %v206 = vld [vmem:[%s0 + $0x5e8] sm:$0xff]
    %v207 = vld [vmem:[%s0 + $0x5f0] sm:$0xff]
    %v208 = vld [vmem:[%s0 + $0x5f8] sm:$0xff]
    %v209 = vld [vmem:[%s0 + $0x600] sm:$0xff]
    %v210 = vld [vmem:[%s0 + $0x608] sm:$0xff]
    %v211 = vld [vmem:[%s0 + $0x610] sm:$0xff]
    %v212 = vld [vmem:[%s0 + $0x618] sm:$0xff]
    %v213 = vld [vmem:[%s0 + $0x620] sm:$0xff]
    %v214 = vld [vmem:[%s0 + $0x628] sm:$0xff]
    %v215 = vld [vmem:[%s0 + $0x630] sm:$0xff]
    %v216 = vld [vmem:[%s0 + $0x638] sm:$0xff]
    %v217 = vld [vmem:[%s0 + $0x640] sm:$0xff]
    %v218 = vld [vmem:[%s0 + $0x648] sm:$0xff]
    %v219 = vld [vmem:[%s0 + $0x650] sm:$0xff]
    %v220 = vld [vmem:[%s0 + $0x658] sm:$0xff]
    %v221 = vld [vmem:[%s0 + $0x660] sm:$0xff]
    %v222 = vld [vmem:[%s0 + $0x668] sm:$0xff]
    %v223 = vld [vmem:[%s0 + $0x670] sm:$0xff]
    %v224 = vld [vmem:[%s0 + $0x678] sm:$0xff]
    %v225 = vld [vmem:[%s0 + $0x680] sm:$0xff]
    %v226 = vld [vmem:[%s0 + $0x688] sm:$0xff]
    %v227 = vld [vmem:[%s0 + $0x690] sm:$0xff]
    %v228 = vld [vmem:[%s0 + $0x698] sm:$0xff]
    %v229 = vld [vmem:[%s0 + $0x6a0] sm:$0xff]
    %v230 = vld [vmem:[%s0 + $0x6a8] sm:$0xff]
    %v231 = vld [vmem:[%s0 + $0x6b0] sm:$0xff]
    %v232 = vld [vmem:[%s0 + $0x6b8] sm:$0xff]
    %v233 = vld [vmem:[%s0 + $0x6c0] sm:$0xff]
    %v234 = vld [vmem:[%s0 + $0x6c8] sm:$0xff]
    %v235 = vld [vmem:[%s0 + $0x6d0] sm:$0xff]
    %v236 = vld [vmem:[%s0 + $0x6d8] sm:$0xff]
    %v237 = vld [vmem:[%s0 + $0x6e0] sm:$0xff]
    %v238 = vld [vmem:[%s0 + $0x6e8] sm:$0xff]
    %v239 = vld [vmem:[%s0 + $0x6f0] sm:$0xff]
    %v240 = vld [vmem:[%s0 + $0x6f8] sm:$0xff]
    %v241 = vld [vmem:[%s0 + $0x700] sm:$0xff]
    %v242 = vld [vmem:[%s0 + $0x708] sm:$0xff]
    %v243 = vld [vmem:[%s0 + $0x710] sm:$0xff]
    %v244 = vld [vmem:[%s0 + $0x718] sm:$0xff]
    %v245 = vld [vmem:[%s0 + $0x720] sm:$0xff]
    %v246 = vld [vmem:[%s0 + $0x728] sm:$0xff]
    %v247 = vld [vmem:[%s0 + $0x730] sm:$0xff]
    %v248 = vld [vmem:[%s0 + $0x738] sm:$0xff]
    %v249 = vld [vmem:[%s0 + $0x740] sm:$0xff]
    %v250 = vld [vmem:[%s0 + $0x748] sm:$0xff]
    %v251 = vld [vmem:[%s0 + $0x750] sm:$0xff]
    %v252 = vld [vmem:[%s0 + $0x758] sm:$0xff]
    %v253 = vld [vmem:[%s0 + $0x760] sm:$0xff]
    %v254 = vld [vmem:[%s0 + $0x768] sm:$0xff]
    %v255 = vld [vmem:[%s0 + $0x770] sm:$0xff]
    %v256 = vld [vmem:[%s0 + $0x778] sm:$0xff]
    %v257 = vld [vmem:[%s0 + $0x780] sm:$0xff]
    %v258 = vld [vmem:[%s0 + $0x788] sm:$0xff]
    %v259 = vld [vmem:[%s0 + $0x790] sm:$0xff]
    %v260 = vld [vmem:[%s0 + $0x798] sm:$0xff]
    %v261 = vld [vmem:[%s0 + $0x7a0] sm:$0xff]
    %v262 = vld [vmem:[%s0 + $0x7a8] sm:$0xff]
    %v263 = vld [vmem:[%s0 + $0x7b0] sm:$0xff]
    %v264 = vld [vmem:[%s0 + $0x7b8] sm:$0xff]
    %v265 = vld [vmem:[%s0 + $0x7c0] sm:$0xff]
    %v266 = vld [vmem:[%s0 + $0x7c8] sm:$0xff]
    %v267 = vld [vmem:[%s0 + $0x7d0] sm:$0xff]
    %v268 = vld [vmem:[%s0 + $0x7d8] sm:$0xff]
    %v269 = vld [vmem:[%s0 + $0x7e0] sm:$0xff]
    %v270 = vld [vmem:[%s0 + $0x7e8] sm:$0xff]
    %v271 = vld [vmem:[%s0 + $0x7f0] sm:$0xff]
    %v272 = vld [vmem:[%s0 + $0x7f8] sm:$0xff]
    %v273 = vld [vmem:[%s0 + $0x800] sm:$0xff]
    %v274 = vld [vmem:[%s0 + $0x808] sm:$0xff]
    %v275 = vld [vmem:[%s0 + $0x810] sm:$0xff]
    %v276 = vld [vmem:[%s0 + $0x818] sm:$0xff]
    %v277 = vld [vmem:[#allocation2] sm:$0xf]
    %v278 = vadd.f32 %v17, %v19
    %v279 = vadd.f32 %v278, %v21
    %v280 = vadd.f32 %v279, %v23
    %v281 = vadd.f32 %v280, %v25
    %v282 = vadd.f32 %v281, %v27
    %v283 = vadd.f32 %v282, %v29
    %v284 = vadd.f32 %v283, %v31
    %v285 = vadd.f32 %v284, %v33
    %v286 = vadd.f32 %v285, %v35
    %v287 = vadd.f32 %v286, %v37
    %v288 = vadd.f32 %v287, %v39
    %v289 = vadd.f32 %v288, %v41
    %v290 = vadd.f32 %v289, %v43
    %v291 = vadd.f32 %v290, %v45
    %v292 = vadd.f32 %v291, %v47
    %v293 = vadd.f32 %v292, %v49
    %v294 = vadd.f32 %v293, %v51
    %v295 = vadd.f32 %v294, %v53
    %v296 = vadd.f32 %v295, %v55
    %v297 = vadd.f32 %v296, %v57
    %v298 = vadd.f32 %v297, %v59
    %v299 = vadd.f32 %v298, %v61
    %v300 = vadd.f32 %v299, %v63
    %v301 = vadd.f32 %v300, %v65
    %v302 = vadd.f32 %v301, %v67
    %v303 = vadd.f32 %v302, %v69
    %v304 = vadd.f32 %v303, %v71
    %v305 = vadd.f32 %v304, %v73
    %v306 = vadd.f32 %v305, %v75
    %v307 = vadd.f32 %v306, %v77
    %v308 = vadd.f32 %v307, %v79
    %v309 = vadd.f32 %v308, %v81
    %v310 = vadd.f32 %v309, %v83
    %v311 = vadd.f32 %v310, %v85
    %v312 = vadd.f32 %v311, %v87
    %v313 = vadd.f32 %v312, %v89
    %v314 = vadd.f32 %v313, %v91
    %v315 = vadd.f32 %v314, %v93
    %v316 = vadd.f32 %v315, %v95
    %v317 = vadd.f32 %v316, %v97
    %v318 = vadd.f32 %v317, %v99
    %v319 = vadd.f32 %v318, %v101
    %v320 = vadd.f32 %v319, %v103
    %v321 = vadd.f32 %v320, %v105
    %v322 = vadd.f32 %v321, %v107
    %v323 = vadd.f32 %v322, %v109
    %v324 = vadd.f32 %v323, %v111
    %v325 = vadd.f32 %v324, %v113
    %v326 = vadd.f32 %v325, %v115
    %v327 = vadd.f32 %v326, %v117
    %v328 = vadd.f32 %v327, %v119
    %v329 = vadd.f32 %v328, %v121
    %v330 = vadd.f32 %v329, %v123
    %v331 = vadd.f32 %v330, %v125
    %v332 = vadd.f32 %v331, %v127
    %v333 = vadd.f32 %v332, %v129
    %v334 = vadd.f32 %v333, %v131
    %v335 = vadd.f32 %v334, %v133
    %v336 = vadd.f32 %v335, %v135
    %v337 = vadd.f32 %v336, %v137
    %v338 = vadd.f32 %v337, %v139
    %v339 = vadd.f32 %v338, %v141
    %v340 = vadd.f32 %v339, %v143
    %v341 = vadd.f32 %v340, %v145
    %v342 = vrot.slane %v341, 4
    %v343 = vadd.f32 %v341, %v342
    %v344 = vrot.slane %v343, 2
    %v345 = vadd.f32 %v343, %v344
    %v346 = vrot.slane %v345, 1
    %v347 = vadd.f32 %v345, %v346
    %vm348 = vcmask 588800
    %v349 = vsel %vm348, %v18, 0.0
    %v350 = vsel %vm348, %v20, 0.0
    %v351 = vadd.f32 %v349, %v350
    %v352 = vsel %vm348, %v22, 0.0
    %v353 = vadd.f32 %v351, %v352
    %v354 = vsel %vm348, %v24, 0.0
    %v355 = vadd.f32 %v353, %v354
    %v356 = vsel %vm348, %v26, 0.0
    %v357 = vadd.f32 %v355, %v356
    %v358 = vsel %vm348, %v28, 0.0
    %v359 = vadd.f32 %v357, %v358
    %v360 = vsel %vm348, %v30, 0.0
    %v361 = vadd.f32 %v359, %v360
    %v362 = vsel %vm348, %v32, 0.0
    %v363 = vadd.f32 %v361, %v362
    %v364 = vsel %vm348, %v34, 0.0
    %v365 = vadd.f32 %v363, %v364
    %v366 = vsel %vm348, %v36, 0.0
    %v367 = vadd.f32 %v365, %v366
    %v368 = vsel %vm348, %v38, 0.0
    %v369 = vadd.f32 %v367, %v368
    %v370 = vsel %vm348, %v40, 0.0
    %v371 = vadd.f32 %v369, %v370
    %v372 = vsel %vm348, %v42, 0.0
    %v373 = vadd.f32 %v371, %v372
    %v374 = vsel %vm348, %v44, 0.0
    %v375 = vadd.f32 %v373, %v374
    %v376 = vsel %vm348, %v46, 0.0
    %v377 = vadd.f32 %v375, %v376
    %v378 = vsel %vm348, %v48, 0.0
    %v379 = vadd.f32 %v377, %v378
    %v380 = vsel %vm348, %v50, 0.0
    %v381 = vadd.f32 %v379, %v380
    %v382 = vsel %vm348, %v52, 0.0
    %v383 = vadd.f32 %v381, %v382
    %v384 = vsel %vm348, %v54, 0.0
    %v385 = vadd.f32 %v383, %v384
    %v386 = vsel %vm348, %v56, 0.0
    %v387 = vadd.f32 %v385, %v386
    %v388 = vsel %vm348, %v58, 0.0
    %v389 = vadd.f32 %v387, %v388
    %v390 = vsel %vm348, %v60, 0.0
    %v391 = vadd.f32 %v389, %v390
    %v392 = vsel %vm348, %v62, 0.0
    %v393 = vadd.f32 %v391, %v392
    %v394 = vsel %vm348, %v64, 0.0
    %v395 = vadd.f32 %v393, %v394
    %v396 = vsel %vm348, %v66, 0.0
    %v397 = vadd.f32 %v395, %v396
    %v398 = vsel %vm348, %v68, 0.0
    %v399 = vadd.f32 %v397, %v398
    %v400 = vsel %vm348, %v70, 0.0
    %v401 = vadd.f32 %v399, %v400
    %v402 = vsel %vm348, %v72, 0.0
    %v403 = vadd.f32 %v401, %v402
    %v404 = vsel %vm348, %v74, 0.0
    %v405 = vadd.f32 %v403, %v404
    %v406 = vsel %vm348, %v76, 0.0
    %v407 = vadd.f32 %v405, %v406
    %v408 = vsel %vm348, %v78, 0.0
    %v409 = vadd.f32 %v407, %v408
    %v410 = vsel %vm348, %v80, 0.0
    %v411 = vadd.f32 %v409, %v410
    %v412 = vsel %vm348, %v82, 0.0
    %v413 = vadd.f32 %v411, %v412
    %v414 = vsel %vm348, %v84, 0.0
    %v415 = vadd.f32 %v413, %v414
    %v416 = vsel %vm348, %v86, 0.0
    %v417 = vadd.f32 %v415, %v416
    %v418 = vsel %vm348, %v88, 0.0
    %v419 = vadd.f32 %v417, %v418
    %v420 = vsel %vm348, %v90, 0.0
    %v421 = vadd.f32 %v419, %v420
    %v422 = vsel %vm348, %v92, 0.0
    %v423 = vadd.f32 %v421, %v422
    %v424 = vsel %vm348, %v94, 0.0
    %v425 = vadd.f32 %v423, %v424
    %v426 = vsel %vm348, %v96, 0.0
    %v427 = vadd.f32 %v425, %v426
    %v428 = vsel %vm348, %v98, 0.0
    %v429 = vadd.f32 %v427, %v428
    %v430 = vsel %vm348, %v100, 0.0
    %v431 = vadd.f32 %v429, %v430
    %v432 = vsel %vm348, %v102, 0.0
    %v433 = vadd.f32 %v431, %v432
    %v434 = vsel %vm348, %v104, 0.0
    %v435 = vadd.f32 %v433, %v434
    %v436 = vsel %vm348, %v106, 0.0
    %v437 = vadd.f32 %v435, %v436
    %v438 = vsel %vm348, %v108, 0.0
    %v439 = vadd.f32 %v437, %v438
    %v440 = vsel %vm348, %v110, 0.0
    %v441 = vadd.f32 %v439, %v440
    %v442 = vsel %vm348, %v112, 0.0
    %v443 = vadd.f32 %v441, %v442
    %v444 = vsel %vm348, %v114, 0.0
    %v445 = vadd.f32 %v443, %v444
    %v446 = vsel %vm348, %v116, 0.0
    %v447 = vadd.f32 %v445, %v446
    %v448 = vsel %vm348, %v118, 0.0
    %v449 = vadd.f32 %v447, %v448
    %v450 = vsel %vm348, %v120, 0.0
    %v451 = vadd.f32 %v449, %v450
    %v452 = vsel %vm348, %v122, 0.0
    %v453 = vadd.f32 %v451, %v452
    %v454 = vsel %vm348, %v124, 0.0
    %v455 = vadd.f32 %v453, %v454
    %v456 = vsel %vm348, %v126, 0.0
    %v457 = vadd.f32 %v455, %v456
    %v458 = vsel %vm348, %v128, 0.0
    %v459 = vadd.f32 %v457, %v458
    %v460 = vsel %vm348, %v130, 0.0
    %v461 = vadd.f32 %v459, %v460
    %v462 = vsel %vm348, %v132, 0.0
    %v463 = vadd.f32 %v461, %v462
    %v464 = vsel %vm348, %v134, 0.0
    %v465 = vadd.f32 %v463, %v464
    %v466 = vsel %vm348, %v136, 0.0
    %v467 = vadd.f32 %v465, %v466
    %v468 = vsel %vm348, %v138, 0.0
    %v469 = vadd.f32 %v467, %v468
    %v470 = vsel %vm348, %v140, 0.0
    %v471 = vadd.f32 %v469, %v470
    %v472 = vsel %vm348, %v142, 0.0
    %v473 = vadd.f32 %v471, %v472
    %v474 = vsel %vm348, %v144, 0.0
    %v475 = vadd.f32 %v473, %v474
    %v476 = vsel %vm348, %v146, 0.0
    %v477 = vadd.f32 %v475, %v476
    %v478 = vrot.slane %v477, 4
    %v479 = vadd.f32 %v477, %v478
    %v480 = vrot.slane %v479, 2
    %v481 = vadd.f32 %v479, %v480
    %v482 = vrot.slane %v481, 1
    %v483 = vadd.f32 %v481, %v482
    %v484 = vadd.f32 %v147, %v149
    %v485 = vadd.f32 %v484, %v151
    %v486 = vadd.f32 %v485, %v153
    %v487 = vadd.f32 %v486, %v155
    %v488 = vadd.f32 %v487, %v157
    %v489 = vadd.f32 %v488, %v159
    %v490 = vadd.f32 %v489, %v161
    %v491 = vadd.f32 %v490, %v163
    %v492 = vadd.f32 %v491, %v165
    %v493 = vadd.f32 %v492, %v167
    %v494 = vadd.f32 %v493, %v169
    %v495 = vadd.f32 %v494, %v171
    %v496 = vadd.f32 %v495, %v173
    %v497 = vadd.f32 %v496, %v175
    %v498 = vadd.f32 %v497, %v177
    %v499 = vadd.f32 %v498, %v179
    %v500 = vadd.f32 %v499, %v181
    %v501 = vadd.f32 %v500, %v183
    %v502 = vadd.f32 %v501, %v185
    %v503 = vadd.f32 %v502, %v187
    %v504 = vadd.f32 %v503, %v189
    %v505 = vadd.f32 %v504, %v191
    %v506 = vadd.f32 %v505, %v193
    %v507 = vadd.f32 %v506, %v195
    %v508 = vadd.f32 %v507, %v197
    %v509 = vadd.f32 %v508, %v199
    %v510 = vadd.f32 %v509, %v201
    %v511 = vadd.f32 %v510, %v203
    %v512 = vadd.f32 %v511, %v205
    %v513 = vadd.f32 %v512, %v207
    %v514 = vadd.f32 %v513, %v209
    %v515 = vadd.f32 %v514, %v211
    %v516 = vadd.f32 %v515, %v213
    %v517 = vadd.f32 %v516, %v215
    %v518 = vadd.f32 %v517, %v217
    %v519 = vadd.f32 %v518, %v219
    %v520 = vadd.f32 %v519, %v221
    %v521 = vadd.f32 %v520, %v223
    %v522 = vadd.f32 %v521, %v225
    %v523 = vadd.f32 %v522, %v227
    %v524 = vadd.f32 %v523, %v229
    %v525 = vadd.f32 %v524, %v231
    %v526 = vadd.f32 %v525, %v233
    %v527 = vadd.f32 %v526, %v235
    %v528 = vadd.f32 %v527, %v237
    %v529 = vadd.f32 %v528, %v239
    %v530 = vadd.f32 %v529, %v241
    %v531 = vadd.f32 %v530, %v243
    %v532 = vadd.f32 %v531, %v245
    %v533 = vadd.f32 %v532, %v247
    %v534 = vadd.f32 %v533, %v249
    %v535 = vadd.f32 %v534, %v251
    %v536 = vadd.f32 %v535, %v253
    %v537 = vadd.f32 %v536, %v255
    %v538 = vadd.f32 %v537, %v257
    %v539 = vadd.f32 %v538, %v259
    %v540 = vadd.f32 %v539, %v261
    %v541 = vadd.f32 %v540, %v263
    %v542 = vadd.f32 %v541, %v265
    %v543 = vadd.f32 %v542, %v267
    %v544 = vadd.f32 %v543, %v269
    %v545 = vadd.f32 %v544, %v271
    %v546 = vadd.f32 %v545, %v273
    %v547 = vadd.f32 %v546, %v275
    %v548 = vrot.slane %v547, 4
    %v549 = vadd.f32 %v547, %v548
    %v550 = vrot.slane %v549, 2
    %v551 = vadd.f32 %v549, %v550
    %v552 = vrot.slane %v551, 1
    %v553 = vadd.f32 %v551, %v552
    %v554 = vsel %vm348, %v148, 0.0
    %v555 = vsel %vm348, %v150, 0.0
    %v556 = vadd.f32 %v554, %v555
    %v557 = vsel %vm348, %v152, 0.0
    %v558 = vadd.f32 %v556, %v557
    %v559 = vsel %vm348, %v154, 0.0
    %v560 = vadd.f32 %v558, %v559
    %v561 = vsel %vm348, %v156, 0.0
    %v562 = vadd.f32 %v560, %v561
    %v563 = vsel %vm348, %v158, 0.0
    %v564 = vadd.f32 %v562, %v563
    %v565 = vsel %vm348, %v160, 0.0
    %v566 = vadd.f32 %v564, %v565
    %v567 = vsel %vm348, %v162, 0.0
    %v568 = vadd.f32 %v566, %v567
    %v569 = vsel %vm348, %v164, 0.0
    %v570 = vadd.f32 %v568, %v569
    %v571 = vsel %vm348, %v166, 0.0
    %v572 = vadd.f32 %v570, %v571
    %v573 = vsel %vm348, %v168, 0.0
    %v574 = vadd.f32 %v572, %v573
    %v575 = vsel %vm348, %v170, 0.0
    %v576 = vadd.f32 %v574, %v575
    %v577 = vsel %vm348, %v172, 0.0
    %v578 = vadd.f32 %v576, %v577
    %v579 = vsel %vm348, %v174, 0.0
    %v580 = vadd.f32 %v578, %v579
    %v581 = vsel %vm348, %v176, 0.0
    %v582 = vadd.f32 %v580, %v581
    %v583 = vsel %vm348, %v178, 0.0
    %v584 = vadd.f32 %v582, %v583
    %v585 = vsel %vm348, %v180, 0.0
    %v586 = vadd.f32 %v584, %v585
    %v587 = vsel %vm348, %v182, 0.0
    %v588 = vadd.f32 %v586, %v587
    %v589 = vsel %vm348, %v184, 0.0
    %v590 = vadd.f32 %v588, %v589
    %v591 = vsel %vm348, %v186, 0.0
    %v592 = vadd.f32 %v590, %v591
    %v593 = vsel %vm348, %v188, 0.0
    %v594 = vadd.f32 %v592, %v593
    %v595 = vsel %vm348, %v190, 0.0
    %v596 = vadd.f32 %v594, %v595
    %v597 = vsel %vm348, %v192, 0.0
    %v598 = vadd.f32 %v596, %v597
    %v599 = vsel %vm348, %v194, 0.0
    %v600 = vadd.f32 %v598, %v599
    %v601 = vsel %vm348, %v196, 0.0
    %v602 = vadd.f32 %v600, %v601
    %v603 = vsel %vm348, %v198, 0.0
    %v604 = vadd.f32 %v602, %v603
    %v605 = vsel %vm348, %v200, 0.0
    %v606 = vadd.f32 %v604, %v605
    %v607 = vsel %vm348, %v202, 0.0
    %v608 = vadd.f32 %v606, %v607
    %v609 = vsel %vm348, %v204, 0.0
    %v610 = vadd.f32 %v608, %v609
    %v611 = vsel %vm348, %v206, 0.0
    %v612 = vadd.f32 %v610, %v611
    %v613 = vsel %vm348, %v208, 0.0
    %v614 = vadd.f32 %v612, %v613
    %v615 = vsel %vm348, %v210, 0.0
    %v616 = vadd.f32 %v614, %v615
    %v617 = vsel %vm348, %v212, 0.0
    %v618 = vadd.f32 %v616, %v617
    %v619 = vsel %vm348, %v214, 0.0
    %v620 = vadd.f32 %v618, %v619
    %v621 = vsel %vm348, %v216, 0.0
    %v622 = vadd.f32 %v620, %v621
    %v623 = vsel %vm348, %v218, 0.0
    %v624 = vadd.f32 %v622, %v623
    %v625 = vsel %vm348, %v220, 0.0
    %v626 = vadd.f32 %v624, %v625
    %v627 = vsel %vm348, %v222, 0.0
    %v628 = vadd.f32 %v626, %v627
    %v629 = vsel %vm348, %v224, 0.0
    %v630 = vadd.f32 %v628, %v629
    %v631 = vsel %vm348, %v226, 0.0
    %v632 = vadd.f32 %v630, %v631
    %v633 = vsel %vm348, %v228, 0.0
    %v634 = vadd.f32 %v632, %v633
    %v635 = vsel %vm348, %v230, 0.0
    %v636 = vadd.f32 %v634, %v635
    %v637 = vsel %vm348, %v232, 0.0
    %v638 = vadd.f32 %v636, %v637
    %v639 = vsel %vm348, %v234, 0.0
    %v640 = vadd.f32 %v638, %v639
    %v641 = vsel %vm348, %v236, 0.0
    %v642 = vadd.f32 %v640, %v641
    %v643 = vsel %vm348, %v238, 0.0
    %v644 = vadd.f32 %v642, %v643
    %v645 = vsel %vm348, %v240, 0.0
    %v646 = vadd.f32 %v644, %v645
    %v647 = vsel %vm348, %v242, 0.0
    %v648 = vadd.f32 %v646, %v647
    %v649 = vsel %vm348, %v244, 0.0
    %v650 = vadd.f32 %v648, %v649
    %v651 = vsel %vm348, %v246, 0.0
    %v652 = vadd.f32 %v650, %v651
    %v653 = vsel %vm348, %v248, 0.0
    %v654 = vadd.f32 %v652, %v653
    %v655 = vsel %vm348, %v250, 0.0
    %v656 = vadd.f32 %v654, %v655
    %v657 = vsel %vm348, %v252, 0.0
    %v658 = vadd.f32 %v656, %v657
    %v659 = vsel %vm348, %v254, 0.0
    %v660 = vadd.f32 %v658, %v659
    %v661 = vsel %vm348, %v256, 0.0
    %v662 = vadd.f32 %v660, %v661
    %v663 = vsel %vm348, %v258, 0.0
    %v664 = vadd.f32 %v662, %v663
    %v665 = vsel %vm348, %v260, 0.0
    %v666 = vadd.f32 %v664, %v665
    %v667 = vsel %vm348, %v262, 0.0
    %v668 = vadd.f32 %v666, %v667
    %v669 = vsel %vm348, %v264, 0.0
    %v670 = vadd.f32 %v668, %v669
    %v671 = vsel %vm348, %v266, 0.0
    %v672 = vadd.f32 %v670, %v671
    %v673 = vsel %vm348, %v268, 0.0
    %v674 = vadd.f32 %v672, %v673
    %v675 = vsel %vm348, %v270, 0.0
    %v676 = vadd.f32 %v674, %v675
    %v677 = vsel %vm348, %v272, 0.0
    %v678 = vadd.f32 %v676, %v677
    %v679 = vsel %vm348, %v274, 0.0
    %v680 = vadd.f32 %v678, %v679
    %v681 = vsel %vm348, %v276, 0.0
    %v682 = vadd.f32 %v680, %v681
    %v683 = vrot.slane %v682, 4
    %v684 = vadd.f32 %v682, %v683
    %v685 = vrot.slane %v684, 2
    %v686 = vadd.f32 %v684, %v685
    %v687 = vrot.slane %v686, 1
    %v688 = vadd.f32 %v686, %v687
    %v693 = vcombine.low %v347, %v483
    %v695 = vunpack.c.l.s4 1983009808
    %v696 = vunpack.c.0.s8 %v695
    %v697 = vlaneseq
    %v698 = vshrl.u32 %v697, 7
    %v699 = vsub.s32 %v696, %v698
    %v700 = vrot.slane %v693, %v699
    %v701 = vcombine.low %v553, %v688
    %v703 = vunpack.c.l.s4 1983009808
    %v704 = vunpack.c.0.s8 %v703
    %v705 = vlaneseq
    %v706 = vshrl.u32 %v705, 7
    %v707 = vsub.s32 %v704, %v706
    %v708 = vrot.slane %v701, %v707
    %vm709 = vcmask 1044484
    %v710 = vsel %vm709, %v700, %v700
    %vm711 = vcmask 1046534
    %v712 = vsel %vm711, %v700, %v710
    %v713 = vrot.slane %v708, 7
    %vm714 = vcmask 1041409
    %v715 = vsel %vm714, %v713, %v712
    %vm716 = vcmask 1043459
    %v717 = vsel %vm716, %v713, %v715
    %vm718 = vcmask 1045509
    %v719 = vsel %vm718, %v713, %v717
    %vm720 = vcmask 1047559
    %v721 = vsel %vm720, %v713, %v719
    %v723 = vadd.f32 %v277, %v721
    %vm724 = vcmask 1041408
    %vm725 = vcmask 584706
    %vm726 = vmor %vm725, %vm724
    %727 = vst.msk [vmem:[#allocation2] sm:$0xf] %vm726, %v723
    // Predicated region
    $region10: #{tpu_custom_call.1} parent=1 // pred_check
      %p728 = pneg %p9
    $region11: #{tpu_custom_call.1} parent=1 // pred_check_branch
      %730 = sbr.rel (%p728) target = $region13
    $region12: #{tpu_custom_call.1} parent=1 // pred_region
      %v731 = vld [vmem:[#allocation2] sm:$0xf]
      %v732 = vmul.f32 %v731, 0.0019230769
      %733 = vst.msk [vmem:[#allocation3] sm:$0xf] %vm726, %v732
    $region13: #{tpu_custom_call.1} parent=1 // pred_fallthru
      _
    // Predicated region
    $region14: #{tpu_custom_call.1} parent=1 // pred_check
      _
    $region15: #{tpu_custom_call.1} parent=1 // pred_check_branch
      %735 = sbr.rel (0) target = $region17
    $region16: #{tpu_custom_call.1} parent=1 // pred_region
      %s737 = ssub.s32 64, 64
      %738 = vsyncadd [#allocation4], %s737
      %s740 = sshll.u32 [#allocation3], 4
      %s741 = int_to_ptr.vmem [resolvable:$true] %s740
      %743 = dma.vmem_to_hbm [thread:$0]  %s741, 64, %s1, [#allocation4]
    $region17: #{tpu_custom_call.1} parent=1 // pred_fallthru
      _
    // Predicated region
    $region18: #{tpu_custom_call.1} parent=1 // pred_check
      _
    $region19: #{tpu_custom_call.1} parent=1 // pred_check_branch
      %745 = sbr.rel (0) target = $region21
    $region20: #{tpu_custom_call.1} parent=1 // pred_region
      %746 = dma.done [#allocation4], 64
    $region21: #{tpu_custom_call.1} parent=1 // pred_fallthru
      _
    %747 = vsyncpa [#allocation4], 1

</llo_original>
